<compile_context>
chip_gen: v5e
topology: v5e:2x2
jax: 0.10.0
libtpu: 0.0.40
codegen_flags: <defaults>
</compile_context>

<pallas_src>
import jax
import jax.numpy as jnp
from jax.experimental import pallas as pl
from jax.experimental.pallas import tpu as pltpu


def _attention_kernel(g_ref, x_ref, wg_ref, wx_ref, bgx_ref, wpsi_ref, bpsi_ref,
                      out_ref):
    # Shapes (channels in sublanes, spatial in lanes):
    #   g_ref:    (F_g,  TS)    x_ref:  (F_l, TS)      streamed, input dtype
    #   wg_ref:   (F_int, F_g)  wx_ref: (F_int, F_l)   BN folded, compute dtype, resident
    #   bgx_ref:  (F_int, 1) f32   (bg_eff + bx_eff fused)
    #   wpsi_ref: (1, F_int) compute dtype   bpsi_ref: (1,) f32 scalar in SMEM
    #   out_ref:  (F_l, TS) lane-dense output block
    g = g_ref[...]            # stay in input dtype -> bf16 MXU operands on bf16 I/O
    x = x_ref[...]

    # 1x1 convs as (C_out, C_in) @ (C_in, TS); f32 accumulation on the MXU.
    g1 = jnp.dot(wg_ref[...], g, preferred_element_type=jnp.float32)
    x1 = jnp.dot(wx_ref[...], x, preferred_element_type=jnp.float32)
    h = jnp.maximum(g1 + x1 + bgx_ref[...], 0.0)                      # f32 (F_int, TS)

    # psi projection: (1, F_int) @ (F_int, TS) -> lane-dense (1, TS), f32 epilogue.
    psi_lin = jnp.dot(wpsi_ref[...], h.astype(wpsi_ref.dtype),
                      preferred_element_type=jnp.float32) + bpsi_ref[0]
    psi = jax.nn.sigmoid(psi_lin)                                      # (1, TS) f32

    # Gating epilogue in x's dtype (no f32 round-trip of the big F_l x TS term).
    out_ref[...] = (x * psi.astype(x.dtype)).astype(out_ref.dtype)


def _fold_bn(w, b, gamma, beta, mean, var, eps=1e-5):
    """Fold eval-mode BatchNorm into a 1x1 conv (w: (C_out, C_in), b: (C_out,))."""
    scale = gamma / jnp.sqrt(var + eps)                 # (C_out,)
    w_eff = w * scale[:, None]                          # (C_out, C_in)
    b_eff = scale * (b - mean) + beta                   # (C_out,)
    return w_eff, b_eff


def _tpu_vmem_and_cores():
    """Physical VMEM bytes per core and TensorCore count (safe defaults)."""
    vmem_bytes = 128 * 1024 * 1024
    num_cores = 2
    try:
        info = pltpu.get_tpu_info()
        vmem_bytes = int(getattr(info, "vmem_capacity_bytes", vmem_bytes))
        num_cores = int(getattr(info, "num_cores",
                                getattr(info, "cores_per_chip", num_cores)))
    except Exception:
        pass
    return vmem_bytes, max(1, min(num_cores, 8))


def _pick_spatial_tile(S, per_col_bytes, budget_bytes, n_batch, num_cores):
    """Lane-aligned spatial tile: capped (512..4096 sweet spot), VMEM-budgeted
    (per_col_bytes already counts intermediates), and shrunk so every
    TensorCore gets grid steps. The tile need not divide S (cdiv grid)."""
    LANE = 128
    s_pad = -(-S // LANE) * LANE
    vmem_cap = max(LANE, (budget_bytes // max(per_col_bytes, 1)) // LANE * LANE)
    tile = min(4096, vmem_cap, s_pad)
    if s_pad >= 512 and vmem_cap >= 512:
        tile = max(tile, 512)                   # keep DMA rows >= ~1-2 KiB
    tile = max(LANE, (tile // LANE) * LANE)
    # Enough grid steps to shard across all TensorCores and keep the pipeline busy.
    min_steps = 2 * num_cores
    while tile > LANE and n_batch * (-(-S // tile)) < min_steps:
        tile = max(LANE, (tile // 2 // LANE) * LANE)
    return tile


def attention_block(g, x, params, *, vmem_block_budget_bytes=None, donate_x=False):
    """g, x: (N, C, H, W) (PyTorch NCHW convention). Returns (N, C, H, W).

    dtype-agnostic I/O: f32 or bf16; all matmuls accumulate in f32, output
    matches x.dtype. Set donate_x=True to alias x's HBM buffer to the output
    (only when the caller no longer needs x).
    """
    N, F_g, H, W = g.shape
    _, F_l, _, _ = x.shape
    F_int = params["wg"].shape[0]
    S = H * W

    # Fold BN (eval mode) into the three 1x1 convs, in f32.
    f32 = jnp.float32
    wg_eff, bg_eff = _fold_bn(params["wg"].astype(f32), params["bg"].astype(f32),
                              params["bn_g_gamma"], params["bn_g_beta"],
                              params["bn_g_mean"], params["bn_g_var"])
    wx_eff, bx_eff = _fold_bn(params["wx"].astype(f32), params["bx"].astype(f32),
                              params["bn_x_gamma"], params["bn_x_beta"],
                              params["bn_x_mean"], params["bn_x_var"])
    wpsi_eff, bpsi_eff = _fold_bn(params["wpsi"].astype(f32), params["bpsi"].astype(f32),
                                  params["bn_p_gamma"], params["bn_p_beta"],
                                  params["bn_p_mean"], params["bn_p_var"])

    # bf16 I/O -> bf16 MXU operands (f32 accumulation); f32 I/O -> exact f32 path.
    compute_dtype = jnp.bfloat16 if x.dtype == jnp.bfloat16 else jnp.float32
    wg_k = wg_eff.astype(compute_dtype)                 # (F_int, F_g)
    wx_k = wx_eff.astype(compute_dtype)                 # (F_int, F_l)
    wpsi_k = wpsi_eff.reshape(1, F_int).astype(compute_dtype)
    bgx = (bg_eff + bx_eff).reshape(F_int, 1)           # f32 fused pre-ReLU bias
    bpsi_k = bpsi_eff.reshape(1)                        # f32 scalar -> SMEM

    # NCHW -> (N, C, S): free reshape, spatial lands in the lane dimension.
    g3 = g.reshape(N, F_g, S)
    x3 = x.reshape(N, F_l, S)

    phys_vmem, num_cores = _tpu_vmem_and_cores()
    if vmem_block_budget_bytes is None:
        # ~40 MiB on 128 MiB parts (v5e/v6e); ~24 MiB on v7x's 64 MiB per-TC VMEM.
        vmem_block_budget_bytes = max(8 << 20, min(40 << 20, phys_vmem // 2 - (8 << 20)))

    in_item = jnp.dtype(x.dtype).itemsize
    # Per lane-column VMEM: double-buffered streamed blocks + f32 in-kernel
    # intermediates (g1/x1/h + psi row) + the gated product before the store.
    per_col_bytes = (2 * (F_g + F_l) * in_item          # g/x input blocks (x2 buffers)
                     + 2 * F_l * in_item                # output block (x2 buffers)
                     + 4 * (3 * F_int + 2)              # f32 g1/x1/h + psi
                     + F_l * in_item)                   # x * psi before store
    tile_s = _pick_spatial_tile(S, per_col_bytes, vmem_block_budget_bytes, N, num_cores)
    grid = (N, pl.cdiv(S, tile_s))                      # ragged last block is masked

    w_item = jnp.dtype(compute_dtype).itemsize
    weight_bytes = w_item * (F_int * (F_g + F_l) + F_int) + 4 * (F_int + 16)
    vmem_limit = per_col_bytes * tile_s + weight_bytes + (4 << 20)
    vmem_limit = int(min(max(vmem_limit, 16 << 20), phys_vmem - (8 << 20)))

    resident = lambda n, s: (0, 0)   # weights/bias: constant block index -> stay resident

    out3 = pl.pallas_call(
        _attention_kernel,
        out_shape=jax.ShapeDtypeStruct((N, F_l, S), x.dtype),
        grid_spec=pltpu.PrefetchScalarGridSpec(
            num_scalar_prefetch=0,
            grid=grid,
            in_specs=[
                pl.BlockSpec((None, F_g, tile_s), lambda n, s: (n, 0, s)),   # g tile
                pl.BlockSpec((None, F_l, tile_s), lambda n, s: (n, 0, s)),   # x tile
                pl.BlockSpec((F_int, F_g), resident),                        # wg (BN folded)
                pl.BlockSpec((F_int, F_l), resident),                        # wx (BN folded)
                pl.BlockSpec((F_int, 1), resident),                          # bg + bx fused
                pl.BlockSpec((1, F_int), resident),                          # wpsi (BN folded)
                pl.BlockSpec(memory_space=pltpu.MemorySpace.SMEM),           # bpsi scalar
            ],
            out_specs=pl.BlockSpec((None, F_l, tile_s), lambda n, s: (n, 0, s)),
        ),
        compiler_params=pltpu.CompilerParams(
            dimension_semantics=("parallel", "parallel"),
            vmem_limit_bytes=vmem_limit),
        input_output_aliases=({1: 0} if donate_x else {}),
    )(g3, x3, wg_k, wx_k, bgx, wpsi_k, bpsi_k)

    return out3.reshape(N, F_l, H, W)


def _reference(g, x, params):
    """Pure-JAX reference of the same (eval-mode BN) forward, for sanity check."""
    def conv1x1_bn(inp, w, b, gamma, beta, mean, var, eps=1e-5):
        y = jnp.einsum("nchw,oc->nohw", inp, w) + b[None, :, None, None]
        scale = gamma / jnp.sqrt(var + eps)
        return scale[None, :, None, None] * (y - mean[None, :, None, None]) + beta[None, :, None, None]

    g1 = conv1x1_bn(g, params["wg"], params["bg"], params["bn_g_gamma"],
                    params["bn_g_beta"], params["bn_g_mean"], params["bn_g_var"])
    x1 = conv1x1_bn(x, params["wx"], params["bx"], params["bn_x_gamma"],
                    params["bn_x_beta"], params["bn_x_mean"], params["bn_x_var"])
    h = jnp.maximum(g1 + x1, 0.0)
    p = conv1x1_bn(h, params["wpsi"], params["bpsi"], params["bn_p_gamma"],
                   params["bn_p_beta"], params["bn_p_mean"], params["bn_p_var"])
    psi = jax.nn.sigmoid(p)
    return x * psi


def make_params(key, F_g, F_l, F_int):
    ks = jax.random.split(key, 8)
    return {
        # 1x1 conv weights stored as (C_out, C_in); biases (C_out,)
        "wg":   0.2 * jax.random.normal(ks[0], (F_int, F_g), jnp.float32),
        "bg":   0.1 * jax.random.normal(ks[1], (F_int,), jnp.float32),
        "wx":   0.2 * jax.random.normal(ks[2], (F_int, F_l), jnp.float32),
        "bx":   0.1 * jax.random.normal(ks[3], (F_int,), jnp.float32),
        "wpsi": 0.2 * jax.random.normal(ks[4], (1, F_int), jnp.float32),
        "bpsi": 0.1 * jax.random.normal(ks[5], (1,), jnp.float32),
        # BatchNorm parameters (deterministic, non-trivial, eval-mode stats)
        "bn_g_gamma": jnp.linspace(0.8, 1.2, F_int, dtype=jnp.float32),
        "bn_g_beta":  jnp.linspace(-0.1, 0.1, F_int, dtype=jnp.float32),
        "bn_g_mean":  0.05 * jnp.arange(F_int, dtype=jnp.float32),
        "bn_g_var":   jnp.linspace(0.9, 1.1, F_int, dtype=jnp.float32),
        "bn_x_gamma": jnp.linspace(1.1, 0.9, F_int, dtype=jnp.float32),
        "bn_x_beta":  jnp.linspace(0.1, -0.1, F_int, dtype=jnp.float32),
        "bn_x_mean":  -0.05 * jnp.arange(F_int, dtype=jnp.float32),
        "bn_x_var":   jnp.linspace(1.1, 0.9, F_int, dtype=jnp.float32),
        "bn_p_gamma": jnp.array([1.05], jnp.float32),
        "bn_p_beta":  jnp.array([-0.02], jnp.float32),
        "bn_p_mean":  jnp.array([0.03], jnp.float32),
        "bn_p_var":   jnp.array([0.95], jnp.float32),
    }


if __name__ == "__main__":
    key = jax.random.PRNGKey(0)
    kg, kx, kp = jax.random.split(key, 3)

    F_g, F_l, F_int = 4, 4, 8
    N, H, W = 2, 16, 16
    g = jax.random.normal(kg, (N, F_g, H, W), jnp.float32)
    x = jax.random.normal(kx, (N, F_l, H, W), jnp.float32)
    params = make_params(kp, F_g, F_l, F_int)

    # f32 path: exact check against the pure-JAX reference.
    out = jax.block_until_ready(attention_block(g, x, params))
    ref = _reference(g, x, params)
    assert out.shape == (N, F_l, H, W)
    assert jnp.allclose(out, ref, atol=1e-5, rtol=1e-5), "f32 mismatch vs reference"

    # bf16 I/O path (bf16 MXU operands, f32 accumulation): loose check only.
    out_bf16 = jax.block_until_ready(
        attention_block(g.astype(jnp.bfloat16), x.astype(jnp.bfloat16), params))
    assert out_bf16.shape == (N, F_l, H, W)
    assert out_bf16.dtype == jnp.bfloat16
    assert jnp.allclose(out_bf16.astype(jnp.float32), ref, atol=1e-1, rtol=1e-1), "bf16 mismatch"

    # Ragged spatial extent (S % 128 != 0): exercises the cdiv grid + masked last block.
    H2 = W2 = 14
    g2 = jax.random.normal(kg, (N, F_g, H2, W2), jnp.float32)
    x2 = jax.random.normal(kx, (N, F_l, H2, W2), jnp.float32)
    out2 = jax.block_until_ready(attention_block(g2, x2, params))
    ref2 = _reference(g2, x2, params)
    assert out2.shape == (N, F_l, H2, W2)
    assert jnp.allclose(out2, ref2, atol=1e-5, rtol=1e-5), "ragged-S mismatch vs reference"

    print("KERNEL_OK")
</pallas_src>

<mosaic_0001>
module attributes {stable_mosaic.version = 11 : i64} {
  func.func @_attention_kernel(%arg0: i32, %arg1: i32, %arg2: memref<1x4x128xf32, #tpu.memory_space<vmem>>, %arg3: memref<1x4x128xf32, #tpu.memory_space<vmem>>, %arg4: memref<8x4xf32, #tpu.memory_space<vmem>>, %arg5: memref<8x4xf32, #tpu.memory_space<vmem>>, %arg6: memref<8x1xf32, #tpu.memory_space<vmem>>, %arg7: memref<1x8xf32, #tpu.memory_space<vmem>>, %arg8: memref<1xf32, #tpu.memory_space<smem>>, %arg9: memref<1x4x128xf32, #tpu.memory_space<vmem>>) attributes {dimension_semantics = [#tpu.dimension_semantics<parallel>, #tpu.dimension_semantics<parallel>], iteration_bounds = array<i64: 2, 2>, scalar_prefetch = 0 : i64, scratch_operands = 0 : i64, tpu.core_type = #tpu.core_type<tc>, window_params = [{transform_indices = @transform_0, window_bounds = array<i64: 1, 4, 128>}, {transform_indices = @transform_1, window_bounds = array<i64: 1, 4, 128>}, {pipeline_mode = #tpu.pipeline_mode<synchronous>, transform_indices = @transform_2, window_bounds = array<i64: 8, 4>}, {pipeline_mode = #tpu.pipeline_mode<synchronous>, transform_indices = @transform_3, window_bounds = array<i64: 8, 4>}, {pipeline_mode = #tpu.pipeline_mode<synchronous>, transform_indices = @transform_4, window_bounds = array<i64: 8, 1>}, {pipeline_mode = #tpu.pipeline_mode<synchronous>, transform_indices = @transform_5, window_bounds = array<i64: 1, 8>}, {transform_indices = @transform_6, window_bounds = array<i64: 1>}, {transform_indices = @transform_7, window_bounds = array<i64: 1, 4, 128>}]} {
    %c0 = arith.constant 0 : index
    %c0_0 = arith.constant 0 : index
    %c0_1 = arith.constant 0 : index
    %0 = vector.load %arg2[%c0, %c0_0, %c0_1] : memref<1x4x128xf32, #tpu.memory_space<vmem>>, vector<1x4x128xf32>
    %1 = vector.shape_cast %0 : vector<1x4x128xf32> to vector<4x128xf32>
    %c0_2 = arith.constant 0 : index
    %c0_3 = arith.constant 0 : index
    %c0_4 = arith.constant 0 : index
    %2 = vector.load %arg3[%c0_2, %c0_3, %c0_4] : memref<1x4x128xf32, #tpu.memory_space<vmem>>, vector<1x4x128xf32>
    %3 = vector.shape_cast %2 : vector<1x4x128xf32> to vector<4x128xf32>
    %c0_5 = arith.constant 0 : index
    %c0_6 = arith.constant 0 : index
    %4 = vector.load %arg4[%c0_5, %c0_6] : memref<8x4xf32, #tpu.memory_space<vmem>>, vector<8x4xf32>
    %cst = arith.constant dense<0.000000e+00> : vector<8x128xf32>
    %5 = tpu.matmul %4, %1, %cst {dimension_numbers = #tpu.dot_dimension_numbers<[1], [0], [0], [1], [0, 0, 1, 1], [], []>} : vector<8x4xf32>, vector<4x128xf32>, vector<8x128xf32> -> vector<8x128xf32>
    %c0_7 = arith.constant 0 : index
    %c0_8 = arith.constant 0 : index
    %6 = vector.load %arg5[%c0_7, %c0_8] : memref<8x4xf32, #tpu.memory_space<vmem>>, vector<8x4xf32>
    %cst_9 = arith.constant dense<0.000000e+00> : vector<8x128xf32>
    %7 = tpu.matmul %6, %3, %cst_9 {dimension_numbers = #tpu.dot_dimension_numbers<[1], [0], [0], [1], [0, 0, 1, 1], [], []>} : vector<8x4xf32>, vector<4x128xf32>, vector<8x128xf32> -> vector<8x128xf32>
    %8 = arith.addf %5, %7 : vector<8x128xf32>
    %c0_10 = arith.constant 0 : index
    %c0_11 = arith.constant 0 : index
    %9 = vector.load %arg6[%c0_10, %c0_11] : memref<8x1xf32, #tpu.memory_space<vmem>>, vector<8x1xf32>
    %10 = vector.broadcast %9 : vector<8x1xf32> to vector<8x128xf32>
    %11 = arith.addf %8, %10 : vector<8x128xf32>
    %cst_12 = arith.constant 0.000000e+00 : f32
    %12 = vector.broadcast %cst_12 : f32 to vector<8x128xf32>
    %13 = arith.maximumf %11, %12 : vector<8x128xf32>
    %c0_13 = arith.constant 0 : index
    %c0_14 = arith.constant 0 : index
    %14 = vector.load %arg7[%c0_13, %c0_14] : memref<1x8xf32, #tpu.memory_space<vmem>>, vector<1x8xf32>
    %cst_15 = arith.constant dense<0.000000e+00> : vector<1x128xf32>
    %15 = tpu.matmul %14, %13, %cst_15 {dimension_numbers = #tpu.dot_dimension_numbers<[1], [0], [0], [1], [0, 0, 1, 1], [], []>} : vector<1x8xf32>, vector<8x128xf32>, vector<1x128xf32> -> vector<1x128xf32>
    %c0_16 = arith.constant 0 : index
    %16 = memref.load %arg8[%c0_16] : memref<1xf32, #tpu.memory_space<smem>>
    %17 = vector.broadcast %16 : f32 to vector<1x128xf32>
    %18 = arith.addf %15, %17 : vector<1x128xf32>
    %19 = arith.negf %18 : vector<1x128xf32>
    %20 = math.exp %19 : vector<1x128xf32>
    %cst_17 = arith.constant 1.000000e+00 : f32
    %21 = vector.broadcast %cst_17 : f32 to vector<1x128xf32>
    %22 = arith.addf %21, %20 : vector<1x128xf32>
    %23 = arith.divf %21, %22 : vector<1x128xf32>
    %24 = vector.broadcast %23 : vector<1x128xf32> to vector<4x128xf32>
    %25 = arith.mulf %3, %24 : vector<4x128xf32>
    %c0_18 = arith.constant 0 : index
    %c0_19 = arith.constant 0 : index
    %c0_20 = arith.constant 0 : index
    %26 = vector.load %arg9[%c0_18, %c0_19, %c0_20] : memref<1x4x128xf32, #tpu.memory_space<vmem>>, vector<1x4x128xf32>
    %27 = vector.shape_cast %26 : vector<1x4x128xf32> to vector<4x128xf32>
    %28 = vector.shape_cast %25 : vector<4x128xf32> to vector<1x4x128xf32>
    tpu.vector_store %arg9[%c0_18, %c0_19, %c0_20], %28 {strides = array<i32>} : memref<1x4x128xf32, #tpu.memory_space<vmem>>, vector<1x4x128xf32>,
    return
  }
  func.func @transform_0(%arg0: i32, %arg1: i32) -> (i32, i32, i32) {
    %c0_i32 = arith.constant 0 : i32
    %c0_i32_0 = arith.constant 0 : i32
    return %arg0, %c0_i32, %arg1 : i32, i32, i32
  }
  func.func @transform_1(%arg0: i32, %arg1: i32) -> (i32, i32, i32) {
    %c0_i32 = arith.constant 0 : i32
    %c0_i32_0 = arith.constant 0 : i32
    return %arg0, %c0_i32, %arg1 : i32, i32, i32
  }
  func.func @transform_2(%arg0: i32, %arg1: i32) -> (i32, i32) {
    %c0_i32 = arith.constant 0 : i32
    %c0_i32_0 = arith.constant 0 : i32
    %c0_i32_1 = arith.constant 0 : i32
    return %c0_i32, %c0_i32_0 : i32, i32
  }
  func.func @transform_3(%arg0: i32, %arg1: i32) -> (i32, i32) {
    %c0_i32 = arith.constant 0 : i32
    %c0_i32_0 = arith.constant 0 : i32
    %c0_i32_1 = arith.constant 0 : i32
    return %c0_i32, %c0_i32_0 : i32, i32
  }
  func.func @transform_4(%arg0: i32, %arg1: i32) -> (i32, i32) {
    %c0_i32 = arith.constant 0 : i32
    %c0_i32_0 = arith.constant 0 : i32
    %c0_i32_1 = arith.constant 0 : i32
    return %c0_i32, %c0_i32_0 : i32, i32
  }
  func.func @transform_5(%arg0: i32, %arg1: i32) -> (i32, i32) {
    %c0_i32 = arith.constant 0 : i32
    %c0_i32_0 = arith.constant 0 : i32
    %c0_i32_1 = arith.constant 0 : i32
    return %c0_i32, %c0_i32_0 : i32, i32
  }
  func.func @transform_6(%arg0: i32, %arg1: i32) -> i32 {
    %c0_i32 = arith.constant 0 : i32
    %c0_i32_0 = arith.constant 0 : i32
    return %c0_i32 : i32
  }
  func.func @transform_7(%arg0: i32, %arg1: i32) -> (i32, i32, i32) {
    %c0_i32 = arith.constant 0 : i32
    %c0_i32_0 = arith.constant 0 : i32
    return %arg0, %c0_i32, %arg1 : i32, i32, i32
  }
}

</mosaic_0001>

<llo_original>
// kernel: tpu_custom_call.1
$region0: #{tpu_custom_call.1}
  #allocation0 [shape = 'u32[]', space=smem, size = 0x4, offset = 0x4, fixed_abs, tag = 'smem constant byte address 0x4 - core index']
  #allocation1 [shape = 'u32[72,128]{1,0:T(1,128)}', space=vmem, size = 0x9000, scoped, tag = 'internal scratch']
  #allocation2 [shape = 'f32[1]{0:T(128)S(6)}', space=smem, size = 0x200, scoped, tag = 'scoped memory for tpu_custom_call.1']
  %s0 = inlined_call_operand.vmem [shape: f32[2,4,256], index: 0, kind: input, shape index: {}]
  %s1 = inlined_call_operand.hbm [shape: f32[2,4,256], index: 1, kind: input, shape index: {}]
  %s2 = inlined_call_operand.vmem [shape: f32[8,4], index: 2, kind: input, shape index: {}]
  %s3 = inlined_call_operand.vmem [shape: f32[8,4], index: 3, kind: input, shape index: {}]
  %s4 = inlined_call_operand.vmem [shape: f32[8,1], index: 4, kind: input, shape index: {}]
  %s5 = inlined_call_operand.vmem [shape: f32[1,8], index: 5, kind: input, shape index: {}]
  %s6 = inlined_call_operand.<no memory space> [shape: f32[1], index: 6, kind: input, shape index: {}]
  %s7 = inlined_call_operand.hbm [shape: f32[2,4,256], index: 7, kind: output, shape index: {}]
  %s8 = sld [smem:[#allocation0]]
  $region65: #{tpu_custom_call.1} parent=0
    _
  %s10 = ssub.s32 1, %s8
  %s11 = scalar_select 0, %s10, %s8
  %12 = sst [smem:[#allocation2]] %s6
  $region1: #{tpu_custom_call.1} parent=0
    #allocation3 [shape = 'u8[4096]{0}', space=vmem, size = 0x1000, scoped, tag = 'input window, operand 1']
    #allocation4 [shape = 's32[2]{0}', space=sflag, size = 0x8, scoped, tag = 'scoped memory for tpu_custom_call.1']
    #allocation5 [shape = 's32[2]{0}', space=sflag, size = 0x8, scoped, tag = 'scoped memory for tpu_custom_call.1']
    #allocation6 [shape = 'u8[4096]{0}', space=vmem, size = 0x1000, scoped, tag = 'output window, operand 0']
    %13 = vsyncpa [#allocation4], 0
    %s14 = scalar_lea.sflag [#allocation4], 1
    %15 = vsyncpa %s14, 0
    %16 = vsyncpa [#allocation5], 0
    %s17 = scalar_lea.sflag [#allocation5], 1
    %18 = vsyncpa %s17, 0
    loop: start=0, step=1, limit=6
    $region2: #{tpu_custom_call.1} parent=1 // loop_pre_header
      _
    $region3: #{tpu_custom_call.1} parent=1 // loop_header
      %s20 = sphi 0, %s24
      %p21 = scmp.ge.s32.totalorder %s20, 6
      %s27 = sphi 0, %s39
      %s28 = sphi 0, %s35
      %s29 = sphi 0, %s27
      %s30 = sphi 0, %s28
      %s31 = sphi 0, %s29
      %s32 = sphi 0, %s30
      %s44 = sphi 0, %s46
      %s47 = sphi 0, %s44
      %s48 = sphi 0, %s47
      %s64 = sphi 0, %s48
      %s72 = sphi 0, %s74
      %s75 = sphi 0, %s72
      %s76 = sphi 0, %s75
      %s92 = sphi 0, %s76
      %s96 = sphi 0, %s96
      %s98 = sphi 0, %s96
      %s99 = sphi 0, %s98
      %s113 = sphi 0, %s99
      %s117 = sphi 0, %s117
      %s119 = sphi 0, %s117
      %s120 = sphi 0, %s119
      %s134 = sphi 0, %s120
      %s138 = sphi 0, %s138
      %s140 = sphi 0, %s138
      %s141 = sphi 0, %s140
      %s155 = sphi 0, %s141
      %s159 = sphi 0, %s159
      %s161 = sphi 0, %s159
      %s162 = sphi 0, %s161
      %s176 = sphi 0, %s162
      %s180 = sphi 0, %s180
      %s182 = sphi 0, %s180
      %s183 = sphi 0, %s182
      %s197 = sphi 0, %s183
      %s205 = sphi 0, %s207
      %s208 = sphi 0, %s205
      %s209 = sphi 0, %s208
      %s225 = sphi 0, %s209
    $region4: #{tpu_custom_call.1} parent=1 // loop_header_branch
      %23 = sbr.rel (%p21) target = $region8
    $region5: #{tpu_custom_call.1} parent=1 // loop_body
      %s25 = ssub.s32 %s20, 1
      %s26 = ssub.s32 %s20, 2
      %s33 = sadd.s32 1, %s28
      %p34 = scmp.ge.s32.totalorder %s33, 2
      %s35 = scalar_select %p34, 0, %s33
      %s36 = sadd.s32 1, %s27
      %s37 = scalar_select %p34, %s36, %s27
      %p38 = scmp.ge.s32.totalorder %s37, 2
      %s39 = scalar_select %p38, 0, %s37
      %s40 = ssub.s32 %s27, %s39
      %s41 = ssub.s32 %s28, %s35
      %s42 = sor.u32 %s40, %s41
      %p43 = scmp.eq.s32.totalorder %s42, 0
      %s45 = sadd.s32 %s44, 1
      %s46 = scalar_select %p43, %s44, %s45
      %p49 = pneg %p43
      %p50 = scmp.eq.s32.totalorder %s20, 3
      %p51 = por %p49, %p50
      %p52 = scmp.ne.s32.totalorder %s44, %s47
      %p53 = scmp.eq.s32.totalorder %s20, 0
      %p54 = por %p52, %p53
      %p55 = scmp.ne.s32.totalorder %s44, %s47
      %p56 = scmp.eq.s32.totalorder %s25, 3
      %p57 = por %p55, %p56
      %p58 = scmp.ne.s32.totalorder %s47, %s48
      %p59 = scmp.eq.s32.totalorder %s25, 0
      %p60 = por %p58, %p59
      %p61 = scmp.ne.s32.totalorder %s47, %s48
      %p62 = scmp.eq.s32.totalorder %s26, 3
      %p63 = por %p61, %p62
      %p65 = scmp.ne.s32.totalorder %s48, %s64
      %p66 = scmp.eq.s32.totalorder %s26, 0
      %p67 = por %p65, %p66
      %s68 = ssub.s32 %s27, %s39
      %s69 = ssub.s32 %s28, %s35
      %s70 = sor.u32 %s68, %s69
      %p71 = scmp.eq.s32.totalorder %s70, 0
      %s73 = sadd.s32 %s72, 1
      %s74 = scalar_select %p71, %s72, %s73
      %p77 = pneg %p71
      %p78 = scmp.eq.s32.totalorder %s20, 3
      %p79 = por %p77, %p78
      %p80 = scmp.ne.s32.totalorder %s72, %s75
      %p81 = scmp.eq.s32.totalorder %s20, 0
      %p82 = por %p80, %p81
      %p83 = scmp.ne.s32.totalorder %s72, %s75
      %p84 = scmp.eq.s32.totalorder %s25, 3
      %p85 = por %p83, %p84
      %p86 = scmp.ne.s32.totalorder %s75, %s76
      %p87 = scmp.eq.s32.totalorder %s25, 0
      %p88 = por %p86, %p87
      %p89 = scmp.ne.s32.totalorder %s75, %s76
      %p90 = scmp.eq.s32.totalorder %s26, 3
      %p91 = por %p89, %p90
      %p93 = scmp.ne.s32.totalorder %s76, %s92
      %p94 = scmp.eq.s32.totalorder %s26, 0
      %p95 = por %p93, %p94
      %s97 = sadd.s32 %s96, 1
      %p100 = scmp.eq.s32.totalorder %s20, 3
      %p101 = scmp.ne.s32.totalorder %s96, %s98
      %p102 = scmp.eq.s32.totalorder %s20, 0
      %p103 = por %p101, %p102
      %p104 = scmp.ne.s32.totalorder %s96, %s98
      %p105 = scmp.eq.s32.totalorder %s25, 3
      %p106 = por %p104, %p105
      %p107 = scmp.ne.s32.totalorder %s98, %s99
      %p108 = scmp.eq.s32.totalorder %s25, 0
      %p109 = por %p107, %p108
      %p110 = scmp.ne.s32.totalorder %s98, %s99
      %p111 = scmp.eq.s32.totalorder %s26, 3
      %p112 = por %p110, %p111
      %p114 = scmp.ne.s32.totalorder %s99, %s113
      %p115 = scmp.eq.s32.totalorder %s26, 0
      %p116 = por %p114, %p115
      %s118 = sadd.s32 %s117, 1
      %p121 = scmp.eq.s32.totalorder %s20, 3
      %p122 = scmp.ne.s32.totalorder %s117, %s119
      %p123 = scmp.eq.s32.totalorder %s20, 0
      %p124 = por %p122, %p123
      %p125 = scmp.ne.s32.totalorder %s117, %s119
      %p126 = scmp.eq.s32.totalorder %s25, 3
      %p127 = por %p125, %p126
      %p128 = scmp.ne.s32.totalorder %s119, %s120
      %p129 = scmp.eq.s32.totalorder %s25, 0
      %p130 = por %p128, %p129
      %p131 = scmp.ne.s32.totalorder %s119, %s120
      %p132 = scmp.eq.s32.totalorder %s26, 3
      %p133 = por %p131, %p132
      %p135 = scmp.ne.s32.totalorder %s120, %s134
      %p136 = scmp.eq.s32.totalorder %s26, 0
      %p137 = por %p135, %p136
      %s139 = sadd.s32 %s138, 1
      %p142 = scmp.eq.s32.totalorder %s20, 3
      %p143 = scmp.ne.s32.totalorder %s138, %s140
      %p144 = scmp.eq.s32.totalorder %s20, 0
      %p145 = por %p143, %p144
      %p146 = scmp.ne.s32.totalorder %s138, %s140
      %p147 = scmp.eq.s32.totalorder %s25, 3
      %p148 = por %p146, %p147
      %p149 = scmp.ne.s32.totalorder %s140, %s141
      %p150 = scmp.eq.s32.totalorder %s25, 0
      %p151 = por %p149, %p150
      %p152 = scmp.ne.s32.totalorder %s140, %s141
      %p153 = scmp.eq.s32.totalorder %s26, 3
      %p154 = por %p152, %p153
      %p156 = scmp.ne.s32.totalorder %s141, %s155
      %p157 = scmp.eq.s32.totalorder %s26, 0
      %p158 = por %p156, %p157
      %s160 = sadd.s32 %s159, 1
      %p163 = scmp.eq.s32.totalorder %s20, 3
      %p164 = scmp.ne.s32.totalorder %s159, %s161
      %p165 = scmp.eq.s32.totalorder %s20, 0
      %p166 = por %p164, %p165
      %p167 = scmp.ne.s32.totalorder %s159, %s161
      %p168 = scmp.eq.s32.totalorder %s25, 3
      %p169 = por %p167, %p168
      %p170 = scmp.ne.s32.totalorder %s161, %s162
      %p171 = scmp.eq.s32.totalorder %s25, 0
      %p172 = por %p170, %p171
      %p173 = scmp.ne.s32.totalorder %s161, %s162
      %p174 = scmp.eq.s32.totalorder %s26, 3
      %p175 = por %p173, %p174
      %p177 = scmp.ne.s32.totalorder %s162, %s176
      %p178 = scmp.eq.s32.totalorder %s26, 0
      %p179 = por %p177, %p178
      %s181 = sadd.s32 %s180, 1
      %p184 = scmp.eq.s32.totalorder %s20, 3
      %p185 = scmp.ne.s32.totalorder %s180, %s182
      %p186 = scmp.eq.s32.totalorder %s20, 0
      %p187 = por %p185, %p186
      %p188 = scmp.ne.s32.totalorder %s180, %s182
      %p189 = scmp.eq.s32.totalorder %s25, 3
      %p190 = por %p188, %p189
      %p191 = scmp.ne.s32.totalorder %s182, %s183
      %p192 = scmp.eq.s32.totalorder %s25, 0
      %p193 = por %p191, %p192
      %p194 = scmp.ne.s32.totalorder %s182, %s183
      %p195 = scmp.eq.s32.totalorder %s26, 3
      %p196 = por %p194, %p195
      %p198 = scmp.ne.s32.totalorder %s183, %s197
      %p199 = scmp.eq.s32.totalorder %s26, 0
      %p200 = por %p198, %p199
      %s201 = ssub.s32 %s27, %s39
      %s202 = ssub.s32 %s28, %s35
      %s203 = sor.u32 %s201, %s202
      %p204 = scmp.eq.s32.totalorder %s203, 0
      %s206 = sadd.s32 %s205, 1
      %s207 = scalar_select %p204, %s205, %s206
      %p210 = pneg %p204
      %p211 = scmp.eq.s32.totalorder %s20, 3
      %p212 = por %p210, %p211
      %p213 = scmp.ne.s32.totalorder %s205, %s208
      %p214 = scmp.eq.s32.totalorder %s20, 0
      %p215 = por %p213, %p214
      %p216 = scmp.ne.s32.totalorder %s205, %s208
      %p217 = scmp.eq.s32.totalorder %s25, 3
      %p218 = por %p216, %p217
      %p219 = scmp.ne.s32.totalorder %s208, %s209
      %p220 = scmp.eq.s32.totalorder %s25, 0
      %p221 = por %p219, %p220
      %p222 = scmp.ne.s32.totalorder %s208, %s209
      %p223 = scmp.eq.s32.totalorder %s26, 3
      %p224 = por %p222, %p223
      %p226 = scmp.ne.s32.totalorder %s209, %s225
      %p227 = scmp.eq.s32.totalorder %s26, 0
      %p228 = por %p226, %p227
      %p229 = scmp.le.s32.totalorder 1, %s20
      %p230 = scmp.lt.s32.totalorder %s20, 5
      %p231 = pnand %p229, %p230
      %p232 = pneg %p231
      // Predicated region
      $region9: #{tpu_custom_call.1} parent=5 // pred_check
        _
      $region10: #{tpu_custom_call.1} parent=5 // pred_check_branch
        %234 = sbr.rel (%p231) target = $region12
      $region11: #{tpu_custom_call.1} parent=5 // pred_region
        %s235 = ssub.s32 %s20, 1
        // Predicated region
        $region13: #{tpu_custom_call.1} parent=11 // pred_check
          %p236 = pneg %p109
        $region14: #{tpu_custom_call.1} parent=11 // pred_check_branch
          %238 = sbr.rel (%p236) target = $region16
        $region15: #{tpu_custom_call.1} parent=11 // pred_region
          _
        $region16: #{tpu_custom_call.1} parent=11 // pred_fallthru
          _
        // Predicated region
        $region17: #{tpu_custom_call.1} parent=11 // pred_check
          %p239 = pneg %p130
        $region18: #{tpu_custom_call.1} parent=11 // pred_check_branch
          %241 = sbr.rel (%p239) target = $region20
        $region19: #{tpu_custom_call.1} parent=11 // pred_region
          _
        $region20: #{tpu_custom_call.1} parent=11 // pred_fallthru
          _
        // Predicated region
        $region21: #{tpu_custom_call.1} parent=11 // pred_check
          %p242 = pneg %p151
        $region22: #{tpu_custom_call.1} parent=11 // pred_check_branch
          %244 = sbr.rel (%p242) target = $region24
        $region23: #{tpu_custom_call.1} parent=11 // pred_region
          _
        $region24: #{tpu_custom_call.1} parent=11 // pred_fallthru
          _
        // Predicated region
        $region25: #{tpu_custom_call.1} parent=11 // pred_check
          %p245 = pneg %p172
        $region26: #{tpu_custom_call.1} parent=11 // pred_check_branch
          %247 = sbr.rel (%p245) target = $region28
        $region27: #{tpu_custom_call.1} parent=11 // pred_region
          _
        $region28: #{tpu_custom_call.1} parent=11 // pred_fallthru
          _
        // Predicated region
        $region29: #{tpu_custom_call.1} parent=11 // pred_check
          %p248 = pneg %p193
        $region30: #{tpu_custom_call.1} parent=11 // pred_check_branch
          %250 = sbr.rel (%p248) target = $region32
        $region31: #{tpu_custom_call.1} parent=11 // pred_region
          _
        $region32: #{tpu_custom_call.1} parent=11 // pred_fallthru
          _
      $region12: #{tpu_custom_call.1} parent=5 // pred_fallthru
        _
      %p251 = scmp.lt.s32.totalorder %s20, 4
      // Predicated region
      $region33: #{tpu_custom_call.1} parent=5 // pred_check
        %p252 = pneg %p251
      $region34: #{tpu_custom_call.1} parent=5 // pred_check_branch
        %254 = sbr.rel (%p252) target = $region36
      $region35: #{tpu_custom_call.1} parent=5 // pred_region
        // Predicated region
        $region37: #{tpu_custom_call.1} parent=35 // pred_check
          %p255 = pneg %p54
        $region38: #{tpu_custom_call.1} parent=35 // pred_check_branch
          %257 = sbr.rel (%p255) target = $region40
        $region39: #{tpu_custom_call.1} parent=35 // pred_region
          %p258 = scmp.lt.s32.totalorder %s27, 1
          %s259 = scalar_select %p258, %s27, 1
          %p260 = scmp.lt.s32.totalorder %s28, 1
          %s261 = scalar_select %p260, %s28, 1
          %s262 = smul.addr %s259, 2
          %s263 = sadd.s32 %s261, %s262
          %s264 = smul.addr %s263, 4
          %s265 = scalar_lea.vmem %s0, %s264
        $region40: #{tpu_custom_call.1} parent=35 // pred_fallthru
          _
        // Predicated region
        $region41: #{tpu_custom_call.1} parent=35 // pred_check
          %p266 = pneg %p82
        $region42: #{tpu_custom_call.1} parent=35 // pred_check_branch
          %268 = sbr.rel (%p266) target = $region44
        $region43: #{tpu_custom_call.1} parent=35 // pred_region
          %s269 = sand.u32 %s72, 1
          %s270 = scalar_lea.sflag [#allocation4], %s269
          %s271 = sand.u32 %s72, 1
          %s272 = smul.addr %s271, 4
          %s273 = scalar_lea.vmem [#allocation3], %s272
          %275 = vsyncadd %s270, 0
          %s276 = smul.addr %s27, 2
          %s277 = sadd.s32 %s28, %s276
          %s278 = smul.addr %s277, 4
          %s279 = scalar_lea.hbm %s1, %s278
          %s281 = sshll.u32 %s279, 4
          %s282 = int_to_ptr.hbm [resolvable:$true] %s281
          %s283 = sshll.u32 %s273, 4
          %s284 = int_to_ptr.vmem [resolvable:$true] %s283
          %286 = dma.hbm_to_vmem [thread:$0]  %s282, 64, %s284, %s270
        $region44: #{tpu_custom_call.1} parent=35 // pred_fallthru
          _
      $region36: #{tpu_custom_call.1} parent=5 // pred_fallthru
        _
      %p287 = scmp.le.s32.totalorder 1, %s20
      %p288 = scmp.lt.s32.totalorder %s20, 5
      %p289 = pnand %p287, %p288
      %p290 = pneg %p289
      // Predicated region
      $region45: #{tpu_custom_call.1} parent=5 // pred_check
        _
      $region46: #{tpu_custom_call.1} parent=5 // pred_check_branch
        %292 = sbr.rel (%p289) target = $region48
      $region47: #{tpu_custom_call.1} parent=5 // pred_region
        %s293 = ssub.s32 %s20, 1
        %s294 = sand.u32 %s75, 1
        %s295 = scalar_lea.sflag [#allocation4], %s294
        %s296 = sand.u32 %s75, 1
        %s297 = smul.addr %s296, 4
        %s298 = scalar_lea.vmem [#allocation3], %s297
        // Predicated region
        $region49: #{tpu_custom_call.1} parent=47 // pred_check
          %p299 = pneg %p88
        $region50: #{tpu_custom_call.1} parent=47 // pred_check_branch
          %301 = sbr.rel (%p299) target = $region52
        $region51: #{tpu_custom_call.1} parent=47 // pred_region
          %303 = dma.done %s295, 64
        $region52: #{tpu_custom_call.1} parent=47 // pred_fallthru
          _
        %p304 = scmp.lt.s32.totalorder %s29, 1
        %s305 = scalar_select %p304, %s29, 1
        %p306 = scmp.lt.s32.totalorder %s30, 1
        %s307 = scalar_select %p306, %s30, 1
        %s308 = smul.addr %s305, 2
        %s309 = sadd.s32 %s307, %s308
        %s310 = smul.addr %s309, 4
        %s311 = scalar_lea.vmem %s0, %s310
        %p312 = pneg %p60
        %p313 = pneg %p57
        %s314 = sand.u32 %s75, 1
        %s315 = scalar_lea.sflag [#allocation4], %s314
        %s316 = sand.u32 %s75, 1
        %s317 = smul.addr %s316, 4
        %s318 = scalar_lea.vmem [#allocation3], %s317
        %p319 = pneg %p88
        %p320 = pneg %p85
        %p321 = pneg %p109
        %p322 = pneg %p106
        %p323 = pneg %p130
        %p324 = pneg %p127
        %p325 = pneg %p151
        %p326 = pneg %p148
        %p327 = pneg %p172
        %p328 = pneg %p169
        %p329 = pneg %p193
        %p330 = pneg %p190
        %p331 = pneg %p221
        %p332 = pneg %p218
        %s333 = sand.u32 %s208, 1
        %s334 = scalar_lea.sflag [#allocation5], %s333
        %s335 = sand.u32 %s208, 1
        %s336 = smul.addr %s335, 4
        %s337 = scalar_lea.vmem [#allocation6], %s336
        %p338 = scmp.lt.s32.totalorder %s29, 1
        %s339 = scalar_select %p338, %s29, 1
        %p340 = scmp.lt.s32.totalorder %s30, 1
        %s341 = scalar_select %p340, %s30, 1
        %s342 = smul.addr %s339, 2
        %s343 = sadd.s32 %s341, %s342
        %s344 = smul.addr %s343, 4
        %s345 = scalar_lea.vmem %s0, %s344
        %v346 = vld [vmem:[%s345] sm:$0xf]
        %v347 = vld [vmem:[%s298] sm:$0xf]
        %v348 = vld [vmem:[%s2] sm:$0xff]
        %v349 = vld [vmem:[%s3] sm:$0xff]
        %vm350 = vcmask 31744
        %v352 = vsel %vm350, %v349, 0
        %vm354 = vcmask 1043456
        %v356 = vsel %vm354, %v347, 0
        %358 = vmatpush.msra.mxu0 0.0
        %359 = vmatpush.msra.mxu0 0.0
        %360 = vmatpush.msra.mxu0 0.0
        %361 = vmatpush.msra.mxu0 0.0
        %362 = vmatpush.msra.mxu0 0.0
        %363 = vmatpush.msra.mxu0 0.0
        %364 = vmatpush.msra.mxu0 0.0
        %365 = vmatpush.msra.mxu0 0.0
        %366 = vmatpush.msra.mxu0 0.0
        %367 = vmatpush.msra.mxu0 0.0
        %368 = vmatpush.msra.mxu0 0.0
        %369 = vmatpush.msra.mxu0 0.0
        %370 = vmatpush.msra.mxu0 0.0
        %371 = vmatpush.msra.mxu0 0.0
        %372 = vmatpush.msra.mxu0 0.0
        %373 = vmatpush.msra.mxu0 %v356
        %374 = vmatmul.f32.gmra.mxu0 %v352
        %v375 = vpop.f32.mrf.mxu0
        %v376 = vadd.f32 0.0, %v375
        %377 = vdwg.mxu0
        %v379 = vsel %vm350, %v348, 0
        %v382 = vsel %vm354, %v346, 0
        %384 = vmatpush.msra.mxu0 0.0
        %385 = vmatpush.msra.mxu0 0.0
        %386 = vmatpush.msra.mxu0 0.0
        %387 = vmatpush.msra.mxu0 0.0
        %388 = vmatpush.msra.mxu0 0.0
        %389 = vmatpush.msra.mxu0 0.0
        %390 = vmatpush.msra.mxu0 0.0
        %391 = vmatpush.msra.mxu0 0.0
        %392 = vmatpush.msra.mxu0 0.0
        %393 = vmatpush.msra.mxu0 0.0
        %394 = vmatpush.msra.mxu0 0.0
        %395 = vmatpush.msra.mxu0 0.0
        %396 = vmatpush.msra.mxu0 0.0
        %397 = vmatpush.msra.mxu0 0.0
        %398 = vmatpush.msra.mxu0 0.0
        %399 = vmatpush.msra.mxu0 %v382
        %400 = vmatmul.f32.gmra.mxu0 %v379
        %v401 = vpop.f32.mrf.mxu0
        %v402 = vadd.f32 %v376, %v401
        %403 = vdwg.mxu0
        %v404 = vld [vmem:[%s4] sm:$0xff]
        %406 = vset.pattern.permute.xlu0 0
        %407 = vperm.xlu0 %406, %v404
        %v408 = vpop.permute.xlu0 %407
        %v410 = vadd.f32 %v402, %v408
        %v411 = vmax.f32 %v410, 0.0
        %v412 = vld [vmem:[%s5] sm:$0x1]
        %s413 = sld [smem:[#allocation2]]
        %v414 = vstv %s413
        %vm415 = vcmask 64512
        %v417 = vsel %vm415, %v412, 0
        %419 = vmatpush.msra.mxu0 0.0
        %420 = vmatpush.msra.mxu0 0.0
        %421 = vmatpush.msra.mxu0 0.0
        %422 = vmatpush.msra.mxu0 0.0
        %423 = vmatpush.msra.mxu0 0.0
        %424 = vmatpush.msra.mxu0 0.0
        %425 = vmatpush.msra.mxu0 0.0
        %426 = vmatpush.msra.mxu0 0.0
        %427 = vmatpush.msra.mxu0 0.0
        %428 = vmatpush.msra.mxu0 0.0
        %429 = vmatpush.msra.mxu0 0.0
        %430 = vmatpush.msra.mxu0 0.0
        %431 = vmatpush.msra.mxu0 0.0
        %432 = vmatpush.msra.mxu0 0.0
        %433 = vmatpush.msra.mxu0 0.0
        %434 = vmatpush.msra.mxu0 %v411
        %435 = vmatmul.f32.gmra.mxu0 %v417
        %v436 = vpop.f32.mrf.mxu0
        %v437 = vadd.f32 %v414, %v436
        %438 = vdwg.mxu0
        %v439 = vxor.u32 %v437, 2147483648
        %v440 = vmul.f32 %v439, 1.442695
        %v441 = vpow.pop %v440
        %v442 = vadd.f32 %v441, 1.0
        %v443 = vrcp.pop %v442
        %v444 = vmul.f32 %v442, %v443
        %v445 = vsub.f32 1.0, %v444
        %v446 = vmul.f32 %v443, %v445
        %v447 = vadd.f32 %v443, %v446
        %vm448 = vweird.f32 %v442
        %vm449 = vweird.f32 %v443
        %vm450 = vmor %vm448, %vm449
        %v451 = vsel %vm450, %v443, %v447
        %v452 = vand.u32 2147483647, %v442
        %vm453 = vcmp.eq.f32.partialorder %v452, 8.507059e+37
        %v454 = vand.u32 %v442, 2147483648
        %v455 = vor.u32 1.1754944e-38, %v454
        %v456 = vsel %vm453, %v455, %v451
        %v457 = vmul.f32 1.0, %v456
        %v458 = vperm.slane %v457, 0
        %v459 = vmul.f32 %v347, %v458
        %460 = vst [vmem:[%s337] sm:$0xf] %v459
        %s461 = sand.u32 %s208, 1
        %s462 = scalar_lea.sflag [#allocation5], %s461
        %s463 = sand.u32 %s208, 1
        %s464 = smul.addr %s463, 4
        %s465 = scalar_lea.vmem [#allocation6], %s464
        // Predicated region
        $region53: #{tpu_custom_call.1} parent=47 // pred_check
          %p466 = pneg %p218
        $region54: #{tpu_custom_call.1} parent=47 // pred_check_branch
          %468 = sbr.rel (%p466) target = $region56
        $region55: #{tpu_custom_call.1} parent=47 // pred_region
          %470 = vsyncadd %s462, 0
          %s471 = smul.addr %s29, 2
          %s472 = sadd.s32 %s30, %s471
          %s473 = smul.addr %s472, 4
          %s474 = scalar_lea.hbm %s7, %s473
          %s476 = sshll.u32 %s465, 4
          %s477 = int_to_ptr.vmem [resolvable:$true] %s476
          %s478 = sshll.u32 %s474, 4
          %s479 = int_to_ptr.hbm [resolvable:$true] %s478
          %481 = dma.vmem_to_hbm [thread:$0]  %s477, 64, %s479, %s462
        $region56: #{tpu_custom_call.1} parent=47 // pred_fallthru
          _
      $region48: #{tpu_custom_call.1} parent=5 // pred_fallthru
        _
      %p482 = scmp.le.s32.totalorder 2, %s20
      // Predicated region
      $region57: #{tpu_custom_call.1} parent=5 // pred_check
        %p483 = pneg %p482
      $region58: #{tpu_custom_call.1} parent=5 // pred_check_branch
        %485 = sbr.rel (%p483) target = $region60
      $region59: #{tpu_custom_call.1} parent=5 // pred_region
        %s486 = ssub.s32 %s20, 2
        // Predicated region
        $region61: #{tpu_custom_call.1} parent=59 // pred_check
          %p487 = pneg %p224
        $region62: #{tpu_custom_call.1} parent=59 // pred_check_branch
          %489 = sbr.rel (%p487) target = $region64
        $region63: #{tpu_custom_call.1} parent=59 // pred_region
          %s490 = sand.u32 %s209, 1
          %s491 = scalar_lea.sflag [#allocation5], %s490
          %s492 = sand.u32 %s209, 1
          %s493 = smul.addr %s492, 4
          %s494 = scalar_lea.vmem [#allocation6], %s493
          %496 = dma.done %s491, 64
        $region64: #{tpu_custom_call.1} parent=59 // pred_fallthru
          _
      $region60: #{tpu_custom_call.1} parent=5 // pred_fallthru
        _
    $region6: #{tpu_custom_call.1} parent=1 // loop_footer
      %s24 = sadd.s32 1, %s20
    $region7: #{tpu_custom_call.1} parent=1 // loop_footer_branch
      %19 = sbr.rel target = $region3
    $region8: #{tpu_custom_call.1} parent=1 // loop_exit
      _
    %497 = vsyncpa [#allocation4], 1
    %s498 = scalar_lea.sflag [#allocation4], 1
    %499 = vsyncpa %s498, 1
    %500 = vsyncpa [#allocation5], 1
    %s501 = scalar_lea.sflag [#allocation5], 1
    %502 = vsyncpa %s501, 1

</llo_original>
